<compile_context>
chip_gen: v7x
topology: tpu7x:2x2x1
jax: 0.10.0
libtpu: 0.0.40
codegen_flags: <defaults>
</compile_context>

<pallas_src>
import jax
import jax.numpy as jnp
from jax.experimental import pallas as pl
from jax.experimental.pallas import tpu as pltpu


def _round_up(v, m):
    return ((v + m - 1) // m) * m


def _pos_classifier_kernel(x_ref, w_ref, b_ref, logits_ref, proba_ref):
    x = x_ref[...]
    # Linear (fc): x @ W^T + b, f32 accumulation on the MXU.
    y = jnp.dot(x, w_ref[...], preferred_element_type=jnp.float32) + b_ref[...]
    # ReLU (fc1)
    y = jnp.maximum(y, 0.0)
    # Exact softmax over the (unpadded) class dim.
    m = jnp.max(y, axis=-1, keepdims=True)
    e = jnp.exp(y - m)
    s = jnp.sum(e, axis=-1, keepdims=True)
    logits_ref[...] = y.astype(logits_ref.dtype)
    proba_ref[...] = (e / s).astype(proba_ref.dtype)


def prepare_params(weight, bias):
    """One-time parameter prep (hoisted out of the per-call path).

    weight: (C, H) in PyTorch nn.Linear layout; bias: (C,).
    Returns (w_t, b2) = ((H, C), (1, C)) f32 arrays.
    """
    w_t = jnp.asarray(weight, jnp.float32).T          # (H, C)
    b2 = jnp.asarray(bias, jnp.float32).reshape(1, -1)  # (1, C)
    return w_t, b2


def _cost(rows, H, C):
    return pl.CostEstimate(
        flops=2 * rows * H * C + 6 * rows * C,
        transcendentals=rows * C,
        bytes_accessed=4 * (rows * H + H * C + C + 2 * rows * C))


def pos_classifier(x, w_t, b2, *, batch_tile=1024):
    """x: (B, H) f32; (w_t, b2) from prepare_params.  Returns (relu_logits, proba)."""
    x = jnp.asarray(x, jnp.float32)
    B, H = x.shape
    H2, C = w_t.shape
    assert H == H2 and b2.shape == (1, C)

    if B <= batch_tile:
        # Small batch: no grid machinery; everything resident in VMEM.
        return pl.pallas_call(
            _pos_classifier_kernel,
            out_shape=(jax.ShapeDtypeStruct((B, C), jnp.float32),
                       jax.ShapeDtypeStruct((B, C), jnp.float32)),
            in_specs=[pl.BlockSpec(memory_space=pltpu.MemorySpace.VMEM)] * 3,
            out_specs=(pl.BlockSpec(memory_space=pltpu.MemorySpace.VMEM),
                       pl.BlockSpec(memory_space=pltpu.MemorySpace.VMEM)),
            cost_estimate=_cost(B, H, C),
        )(x, w_t, b2)

    # Large batch: tile over B only; weight/bias stay resident across the grid.
    # Best-effort even tile count so v7x's two TensorCores both get work.
    nt = pl.cdiv(B, batch_tile)
    if nt > 1 and nt % 2 == 1:
        nt += 1
    TB = _round_up(pl.cdiv(B, nt), 8)          # sublane-aligned batch tile
    nt = pl.cdiv(B, TB)                        # ragged tail handled by Pallas

    logits, proba = pl.pallas_call(
        _pos_classifier_kernel,
        out_shape=(jax.ShapeDtypeStruct((B, C), jnp.float32),
                   jax.ShapeDtypeStruct((B, C), jnp.float32)),
        grid=(nt,),
        in_specs=[
            pl.BlockSpec((TB, H), lambda i: (i, 0)),   # streamed per tile
            pl.BlockSpec((H, C), lambda i: (0, 0)),    # resident weights
            pl.BlockSpec((1, C), lambda i: (0, 0)),    # resident bias
        ],
        out_specs=(
            pl.BlockSpec((TB, C), lambda i: (i, 0)),   # unpadded (B, C) writeback
            pl.BlockSpec((TB, C), lambda i: (i, 0)),
        ),
        compiler_params=pltpu.CompilerParams(
            dimension_semantics=("parallel",)),
        cost_estimate=_cost(B, H, C),
    )(x, w_t, b2)
    return logits, proba


if __name__ == "__main__":
    key = jax.random.PRNGKey(0)
    k_x, k_w, k_b, k_x2 = jax.random.split(key, 4)

    pre_hidden = 32
    num_classes = 16

    # Deterministic parameter init (mimics nn.Linear uniform bound 1/sqrt(fan_in)).
    bound = 1.0 / (pre_hidden ** 0.5)
    weight = jax.random.uniform(k_w, (num_classes, pre_hidden),
                                minval=-bound, maxval=bound, dtype=jnp.float32)
    bias = jax.random.uniform(k_b, (num_classes,),
                              minval=-bound, maxval=bound, dtype=jnp.float32)

    # One-time parameter prep (hoisted out of the call path).
    w_t, b2 = prepare_params(weight, bias)

    def ref(xv):
        lg = jnp.maximum(xv @ weight.T + bias, 0.0)
        return lg, jax.nn.softmax(lg, axis=-1)

    # Small batch -> gridless path.
    x_small = jax.random.normal(k_x, (8, pre_hidden), dtype=jnp.float32)
    logits, proba = pos_classifier(x_small, w_t, b2)
    jax.block_until_ready((logits, proba))
    rl, rp = ref(x_small)
    assert logits.shape == (8, num_classes) and proba.shape == (8, num_classes)
    assert jnp.allclose(logits, rl, atol=1e-5, rtol=1e-5)
    assert jnp.allclose(proba, rp, atol=1e-5, rtol=1e-5)

    # Larger batch (non-divisible by the tile) -> tiled path with ragged tail.
    x_big = jax.random.normal(k_x2, (1000, pre_hidden), dtype=jnp.float32)
    logits_b, proba_b = pos_classifier(x_big, w_t, b2, batch_tile=256)
    jax.block_until_ready((logits_b, proba_b))
    rlb, rpb = ref(x_big)
    assert logits_b.shape == (1000, num_classes)
    assert jnp.allclose(logits_b, rlb, atol=1e-5, rtol=1e-5)
    assert jnp.allclose(proba_b, rpb, atol=1e-5, rtol=1e-5)

    print("KERNEL_OK")
</pallas_src>

<mosaic_0001>
module attributes {stable_mosaic.version = 11 : i64} {
  func.func @_pos_classifier_kernel(%arg0: memref<8x32xf32, #tpu.memory_space<vmem>>, %arg1: memref<32x16xf32, #tpu.memory_space<vmem>>, %arg2: memref<1x16xf32, #tpu.memory_space<vmem>>, %arg3: memref<8x16xf32, #tpu.memory_space<vmem>>, %arg4: memref<8x16xf32, #tpu.memory_space<vmem>>) attributes {dimension_semantics = [], scalar_prefetch = 0 : i64, scratch_operands = 0 : i64, tpu.core_type = #tpu.core_type<tc>} {
    %c0 = arith.constant 0 : index
    %c0_0 = arith.constant 0 : index
    %0 = vector.load %arg0[%c0, %c0_0] : memref<8x32xf32, #tpu.memory_space<vmem>>, vector<8x32xf32>
    %c0_1 = arith.constant 0 : index
    %c0_2 = arith.constant 0 : index
    %1 = vector.load %arg1[%c0_1, %c0_2] : memref<32x16xf32, #tpu.memory_space<vmem>>, vector<32x16xf32>
    %cst = arith.constant dense<0.000000e+00> : vector<8x16xf32>
    %2 = tpu.matmul %0, %1, %cst {dimension_numbers = #tpu.dot_dimension_numbers<[1], [0], [0], [1], [0, 0, 1, 1], [], []>} : vector<8x32xf32>, vector<32x16xf32>, vector<8x16xf32> -> vector<8x16xf32>
    %c0_3 = arith.constant 0 : index
    %c0_4 = arith.constant 0 : index
    %3 = vector.load %arg2[%c0_3, %c0_4] : memref<1x16xf32, #tpu.memory_space<vmem>>, vector<1x16xf32>
    %4 = vector.broadcast %3 : vector<1x16xf32> to vector<8x16xf32>
    %5 = arith.addf %2, %4 : vector<8x16xf32>
    %cst_5 = arith.constant 0.000000e+00 : f32
    %6 = vector.broadcast %cst_5 : f32 to vector<8x16xf32>
    %7 = arith.maximumf %5, %6 : vector<8x16xf32>
    %cst_6 = arith.constant dense<0xFF800000> : vector<8xf32>
    %8 = vector.multi_reduction <maximumf>, %7, %cst_6 [1] : vector<8x16xf32> to vector<8xf32>
    %9 = vector.shape_cast %8 : vector<8xf32> to vector<8x1xf32>
    %10 = vector.broadcast %9 : vector<8x1xf32> to vector<8x16xf32>
    %11 = arith.subf %7, %10 : vector<8x16xf32>
    %12 = math.exp %11 : vector<8x16xf32>
    %cst_7 = arith.constant dense<0.000000e+00> : vector<8xf32>
    %13 = vector.multi_reduction <add>, %12, %cst_7 [1] : vector<8x16xf32> to vector<8xf32>
    %14 = vector.shape_cast %13 : vector<8xf32> to vector<8x1xf32>
    %c0_8 = arith.constant 0 : index
    %c0_9 = arith.constant 0 : index
    %15 = vector.load %arg3[%c0_8, %c0_9] : memref<8x16xf32, #tpu.memory_space<vmem>>, vector<8x16xf32>
    tpu.vector_store %arg3[%c0_8, %c0_9], %7 {strides = array<i32>} : memref<8x16xf32, #tpu.memory_space<vmem>>, vector<8x16xf32>,
    %16 = vector.broadcast %14 : vector<8x1xf32> to vector<8x16xf32>
    %17 = arith.divf %12, %16 : vector<8x16xf32>
    %c0_10 = arith.constant 0 : index
    %c0_11 = arith.constant 0 : index
    %18 = vector.load %arg4[%c0_10, %c0_11] : memref<8x16xf32, #tpu.memory_space<vmem>>, vector<8x16xf32>
    tpu.vector_store %arg4[%c0_10, %c0_11], %17 {strides = array<i32>} : memref<8x16xf32, #tpu.memory_space<vmem>>, vector<8x16xf32>,
    return
  }
}

</mosaic_0001>

<llo_original>
// kernel: tpu_custom_call.1
$region0: #{tpu_custom_call.1}
  #allocation0 [shape = 'u32[]', space=smem, size = 0x4, offset = 0x4, fixed_abs, tag = 'smem constant byte address 0x4 - core index']
  #allocation1 [shape = 'u32[144,128]{1,0:T(1,128)}', space=vmem, size = 0x12000, scoped, tag = 'internal scratch']
  %s0 = inlined_call_operand.vmem [shape: f32[8,32], index: 0, kind: input, shape index: {}]
  %s1 = inlined_call_operand.vmem [shape: f32[32,16], index: 1, kind: input, shape index: {}]
  %s2 = inlined_call_operand.vmem [shape: f32[1,16], index: 2, kind: input, shape index: {}]
  %s3 = inlined_call_operand.hbm [shape: f32[8,16], index: 3, kind: output, shape index: {0}]
  %s4 = inlined_call_operand.hbm [shape: f32[8,16], index: 4, kind: output, shape index: {1}]
  %5 = xla_tuple %s3, %s4
  %s6 = sld [smem:[#allocation0]]
  $region30: #{tpu_custom_call.1} parent=0
    _
  %s8 = ssub.s32 1, %s6
  %s9 = scalar_select 0, %s8, %s6
  $region1: #{tpu_custom_call.1} parent=0
    #allocation2 [shape = 'u8[4096]{0}', space=vmem, size = 0x1000, scoped, tag = 'output window, operand 0, single buffered']
    #allocation3 [shape = 's32[1]{0}', space=sflag, size = 0x4, scoped, tag = 'scoped memory for tpu_custom_call.1']
    #allocation4 [shape = 'u8[4096]{0}', space=vmem, size = 0x1000, scoped, tag = 'output window, operand 1, single buffered']
    #allocation5 [shape = 's32[1]{0}', space=sflag, size = 0x4, scoped, tag = 'scoped memory for tpu_custom_call.1']
    %10 = vsyncpa [#allocation3], 0
    %11 = vsyncpa [#allocation5], 0
    // Predicated region
    $region2: #{tpu_custom_call.1} parent=1 // pred_check
      _
    $region3: #{tpu_custom_call.1} parent=1 // pred_check_branch
      %13 = sbr.rel (0) target = $region5
    $region4: #{tpu_custom_call.1} parent=1 // pred_region
      _
    $region5: #{tpu_custom_call.1} parent=1 // pred_fallthru
      _
    // Predicated region
    $region6: #{tpu_custom_call.1} parent=1 // pred_check
      _
    $region7: #{tpu_custom_call.1} parent=1 // pred_check_branch
      %15 = sbr.rel (0) target = $region9
    $region8: #{tpu_custom_call.1} parent=1 // pred_region
      _
    $region9: #{tpu_custom_call.1} parent=1 // pred_fallthru
      _
    // Predicated region
    $region10: #{tpu_custom_call.1} parent=1 // pred_check
      _
    $region11: #{tpu_custom_call.1} parent=1 // pred_check_branch
      %17 = sbr.rel (0) target = $region13
    $region12: #{tpu_custom_call.1} parent=1 // pred_region
      _
    $region13: #{tpu_custom_call.1} parent=1 // pred_fallthru
      _
    %v18 = vld [vmem:[%s0] sm:$0xff]
    %v19 = vld [vmem:[%s1] sm:$0xff]
    %v20 = vld [vmem:[%s1 + $0x8] sm:$0xff]
    %v21 = vld [vmem:[%s1 + $0x10] sm:$0xff]
    %v22 = vld [vmem:[%s1 + $0x18] sm:$0xff]
    %v23 = vld [vmem:[%s2] sm:$0x1]
    %v25 = vlaneseq
    %v26 = vshrl.u32 %v25, 7
    %v27 = vsub.s32 0, %v26
    %v28 = vrot.slane %v23, %v27
    %vm30 = vcmask 261120
    %v32 = vsel %vm30, %v18, 0
    %34 = vmatprep.subr.mxu0 0.0
    %35 = vmatpush1.msra.mxu0 %v19
    %36 = vmatprep.subr.mxu0 0.0
    %37 = vmatpush1.msra.mxu0 %v20
    %38 = vmatprep.subr.mxu0 0.0
    %39 = vmatpush1.msra.mxu0 %v21
    %40 = vmatprep.subr.mxu0 0.0
    %41 = vmatpush1.msra.mxu0 %v22
    %42 = vmatprep.subr.mxu0 0.0
    %43 = vmatpush1.msra.mxu0 0.0
    %44 = vmatprep.subr.mxu0 0.0
    %45 = vmatpush1.msra.mxu0 0.0
    %46 = vmatprep.subr.mxu0 0.0
    %47 = vmatpush1.msra.mxu0 0.0
    %48 = vmatprep.subr.mxu0 0.0
    %49 = vmatpush1.msra.mxu0 0.0
    %50 = vmatprep.subr.mxu0 0.0
    %51 = vmatpush1.msra.mxu0 0.0
    %52 = vmatprep.subr.mxu0 0.0
    %53 = vmatpush1.msra.mxu0 0.0
    %54 = vmatprep.subr.mxu0 0.0
    %55 = vmatpush1.msra.mxu0 0.0
    %56 = vmatprep.subr.mxu0 0.0
    %57 = vmatpush1.msra.mxu0 0.0
    %58 = vmatprep.subr.mxu0 0.0
    %59 = vmatpush1.msra.mxu0 0.0
    %60 = vmatprep.subr.mxu0 0.0
    %61 = vmatpush1.msra.mxu0 0.0
    %62 = vmatprep.subr.mxu0 0.0
    %63 = vmatpush1.msra.mxu0 0.0
    %64 = vmatprep.subr.mxu0 0.0
    %65 = vmatpush1.msra.mxu0 0.0
    %66 = vmatprep.subr.mxu0 0.0
    %67 = vmatpush1.msra.mxu0 0.0
    %68 = vmatprep.subr.mxu0 0.0
    %69 = vmatpush1.msra.mxu0 0.0
    %70 = vmatprep.subr.mxu0 0.0
    %71 = vmatpush1.msra.mxu0 0.0
    %72 = vmatprep.subr.mxu0 0.0
    %73 = vmatpush1.msra.mxu0 0.0
    %74 = vmatprep.subr.mxu0 0.0
    %75 = vmatpush1.msra.mxu0 0.0
    %76 = vmatprep.subr.mxu0 0.0
    %77 = vmatpush1.msra.mxu0 0.0
    %78 = vmatprep.subr.mxu0 0.0
    %79 = vmatpush1.msra.mxu0 0.0
    %80 = vmatprep.subr.mxu0 0.0
    %81 = vmatpush1.msra.mxu0 0.0
    %82 = vmatprep.subr.mxu0 0.0
    %83 = vmatpush1.msra.mxu0 0.0
    %84 = vmatprep.subr.mxu0 0.0
    %85 = vmatpush1.msra.mxu0 0.0
    %86 = vmatprep.subr.mxu0 0.0
    %87 = vmatpush1.msra.mxu0 0.0
    %88 = vmatprep.subr.mxu0 0.0
    %89 = vmatpush1.msra.mxu0 0.0
    %90 = vmatprep.subr.mxu0 0.0
    %91 = vmatpush1.msra.mxu0 0.0
    %92 = vmatprep.subr.mxu0 0.0
    %93 = vmatpush1.msra.mxu0 0.0
    %94 = vmatprep.subr.mxu0 0.0
    %95 = vmatpush1.msra.mxu0 0.0
    %96 = vmatprep.subr.mxu0 0.0
    %97 = vmatpush1.msra.mxu0 0.0
    %98 = vmatprep.mubr.f32.mxu0 0.0
    %99 = vmatmul.mubr.f32.gmra.mrb[0].mxu0 %v32
    %v100 = vpop.f32.mrb[0].mxu0
    %v101 = vadd.f32 %v28, %v100
    %v102 = vpop.f32.mrb[0].mxu0
    %103 = vdwg.mxu0
    %v104 = vmax.f32 %v101, 0.0
    %vm105 = vcmask 130048
    %v106 = vsel %vm105, %v104, -inf
    %107 = vmax.xlane.f32.xlu0 %v106
    %v108 = vpop.xlane.xlu0 %107
    %v109 = vsub.f32 %v104, %v108
    %v110 = vmul.f32 %v109, 1.442695
    %v111 = vpow.pop %v110
    %v112 = vsel %vm105, %v111, 0.0
    %113 = vadd.xlane.f32.xlu0 %v112
    %v114 = vpop.xlane.xlu0 %113
    %115 = vst.msk [vmem:[#allocation2] sm:$0xff] %vm105, %v104
    %v116 = vrcp.pop %v114
    %v117 = vmul.f32 %v111, %v116
    %118 = vst.msk [vmem:[#allocation4] sm:$0xff] %vm105, %v117
    // Predicated region
    $region14: #{tpu_custom_call.1} parent=1 // pred_check
      _
    $region15: #{tpu_custom_call.1} parent=1 // pred_check_branch
      %120 = sbr.rel (0) target = $region17
    $region16: #{tpu_custom_call.1} parent=1 // pred_region
      %s122 = ssub.s32 128, 128
      %123 = vsyncadd [#allocation3], %s122
      %s125 = sshll.u32 [#allocation2], 4
      %s126 = int_to_ptr.vmem [resolvable:$true] %s125
      %128 = dma.vmem_to_hbm [thread:$0]  %s126, 128, %s3, [#allocation3]
    $region17: #{tpu_custom_call.1} parent=1 // pred_fallthru
      _
    // Predicated region
    $region18: #{tpu_custom_call.1} parent=1 // pred_check
      _
    $region19: #{tpu_custom_call.1} parent=1 // pred_check_branch
      %130 = sbr.rel (0) target = $region21
    $region20: #{tpu_custom_call.1} parent=1 // pred_region
      %s132 = ssub.s32 128, 128
      %133 = vsyncadd [#allocation5], %s132
      %s135 = sshll.u32 [#allocation4], 4
      %s136 = int_to_ptr.vmem [resolvable:$true] %s135
      %138 = dma.vmem_to_hbm [thread:$0]  %s136, 128, %s4, [#allocation5]
    $region21: #{tpu_custom_call.1} parent=1 // pred_fallthru
      _
    // Predicated region
    $region22: #{tpu_custom_call.1} parent=1 // pred_check
      _
    $region23: #{tpu_custom_call.1} parent=1 // pred_check_branch
      %140 = sbr.rel (0) target = $region25
    $region24: #{tpu_custom_call.1} parent=1 // pred_region
      %141 = dma.done [#allocation3], 128
    $region25: #{tpu_custom_call.1} parent=1 // pred_fallthru
      _
    // Predicated region
    $region26: #{tpu_custom_call.1} parent=1 // pred_check
      _
    $region27: #{tpu_custom_call.1} parent=1 // pred_check_branch
      %143 = sbr.rel (0) target = $region29
    $region28: #{tpu_custom_call.1} parent=1 // pred_region
      %144 = dma.done [#allocation5], 128
    $region29: #{tpu_custom_call.1} parent=1 // pred_fallthru
      _
    %145 = vsyncpa [#allocation3], 1
    %146 = vsyncpa [#allocation5], 1

</llo_original>
